<compile_context>
chip_gen: v7x
topology: tpu7x:2x2x1
jax: 0.10.0
libtpu: 0.0.40
codegen_flags: <defaults>
</compile_context>

<pallas_src>
import functools

import jax
import jax.numpy as jnp
from jax.experimental import pallas as pl
from jax.experimental.pallas import tpu as pltpu


def _round_up(x, m):
    return ((x + m - 1) // m) * m


def _lane_group_reduce(x, group, m, op):
    """Cyclic reduce over `m` contiguous lane groups of width `group`; the result is
    replicated into every group.  log2(m) roll butterfly when m is a power of two."""
    if m == 1:
        return x
    if (m & (m - 1)) == 0:
        acc = x
        shift = group
        while shift < m * group:
            acc = op(acc, pltpu.roll(acc, shift=shift, axis=1))
            shift *= 2
        return acc
    acc = x
    for k in range(1, m):
        acc = op(acc, pltpu.roll(x, shift=k * group, axis=1))
    return acc


def semantic_attn_kernel(z_ref, w1_ref, b1_ref, w2_ref, o_ref, *, M, D):
    """One tile of rows: fused projection -> softmax over M views -> weighted sum."""
    z = z_ref[...]                                        # (tn, M*D), streamed dtype
    z_mx = z.astype(jnp.bfloat16)                         # MXU operand (bf16 in, f32 acc)

    # Projection for all M views in one wide matmul against the block-diagonal W1.
    h = jnp.tanh(
        jnp.dot(z_mx, w1_ref[...], preferred_element_type=jnp.float32)
        + b1_ref[...]
    )                                                     # (tn, M*H) f32

    # hidden -> 1 Linear as a second tiny MXU matmul against broadcast-W2: each view's
    # score comes out replicated across its own D-lane group (lane-aligned with z).
    s = jnp.dot(h.astype(jnp.bfloat16), w2_ref[...],
                preferred_element_type=jnp.float32)       # (tn, M*D) f32

    # Softmax over the M views (dim=1), dense over lanes via roll butterflies.
    s_max = _lane_group_reduce(s, D, M, jnp.maximum)
    e = jnp.exp(s - s_max)                                # one dense EUP op per vreg
    denom = _lane_group_reduce(e, D, M, jnp.add)
    # approx=True would move the reciprocal to the (idle) EUP slot; exact kept for parity
    # with the PyTorch module (cost is negligible in this HBM-bound kernel).
    beta = e * pl.reciprocal(denom, approx=False)         # (tn, M*D)

    # (beta * z).sum(dim=1): dense multiply, then sum the M lane groups.
    weighted = beta * z.astype(jnp.float32)
    summed = _lane_group_reduce(weighted, D, M, jnp.add)  # every group holds the sum
    o_ref[...] = summed[:, :D].astype(o_ref.dtype)


def semantic_attention(z, w1, b1, w2, *, tile_n=2048):
    """z: (N, M, D); w1: (D, H); b1: (H,); w2: (H, 1)  ->  (N, D) in z.dtype.

    Pass z already in bf16 to halve the dominant HBM stream; accumulation stays f32.
    """
    N, M, D = z.shape
    H = w1.shape[1]

    z2d = z.reshape(N, M * D)                             # lane-dense slab (free in HBM)

    # Resident weights (tiny): block-diag W1, tiled b1, broadcast W2.  MXU operands in bf16.
    w1_blk = jnp.kron(jnp.eye(M, dtype=w1.dtype), w1).astype(jnp.bfloat16)        # (M*D, M*H)
    b1_blk = jnp.tile(b1, M).reshape(1, M * H).astype(jnp.float32)                # (1, M*H)
    w2_bcast = jnp.kron(jnp.eye(M, dtype=w2.dtype),
                        jnp.tile(w2.reshape(H, 1), (1, D))).astype(jnp.bfloat16)  # (M*H, M*D)

    # Node tiling: big tiles amortize the ~0.35 us/step overhead; rows a sublane multiple.
    tile_n = _round_up(max(8, min(int(tile_n), _round_up(N, 8))), 8)
    if N >= 4096 and pl.cdiv(N, tile_n) < 2:
        tile_n = _round_up(pl.cdiv(N, 2), 8)              # keep both v7x TensorCores busy
    num_tiles = pl.cdiv(N, tile_n)                        # ragged last tile handled by Pallas

    # VMEM limit from the actual tile footprint (double-buffered streams + f32 temporaries).
    z_bytes = tile_n * M * D * z2d.dtype.itemsize
    o_bytes = tile_n * D * jnp.dtype(z.dtype).itemsize
    wt_bytes = w1_blk.size * 2 + w2_bcast.size * 2 + b1_blk.size * 4
    tmp_bytes = tile_n * (M * H + 3 * M * D) * 4
    vmem_limit = int(2 * z_bytes + 2 * o_bytes + 2 * wt_bytes + tmp_bytes + (8 << 20))
    vmem_limit = min(max(vmem_limit, 16 << 20), 64 << 20)

    return pl.pallas_call(
        functools.partial(semantic_attn_kernel, M=M, D=D),
        out_shape=jax.ShapeDtypeStruct((N, D), z.dtype),
        grid_spec=pltpu.PrefetchScalarGridSpec(
            num_scalar_prefetch=0,
            grid=(num_tiles,),
            in_specs=[
                pl.BlockSpec((tile_n, M * D), lambda i: (i, 0)),   # z tile (contiguous DMA)
                pl.BlockSpec((M * D, M * H), lambda i: (0, 0)),    # block-diag W1 (resident)
                pl.BlockSpec((1, M * H), lambda i: (0, 0)),        # tiled b1 (resident)
                pl.BlockSpec((M * H, M * D), lambda i: (0, 0)),    # broadcast W2 (resident)
            ],
            out_specs=pl.BlockSpec((tile_n, D), lambda i: (i, 0)),
        ),
        compiler_params=pltpu.CompilerParams(
            dimension_semantics=("parallel",),
            vmem_limit_bytes=vmem_limit,
        ),
    )(z2d, w1_blk, b1_blk, w2_bcast)


def semantic_attention_ref(z, w1, b1, w2, matmul_dtype=None):
    """Pure-JAX reference mirroring the PyTorch module.

    matmul_dtype=jnp.bfloat16 rounds the matmul operands exactly like the kernel does
    (f32 accumulation, f32 everywhere else) for a tight structural check."""
    zf = z.astype(jnp.float32)
    if matmul_dtype is None:
        h = jnp.tanh(jnp.einsum("nmd,dh->nmh", zf, w1.astype(jnp.float32)) + b1)
        w = jnp.einsum("nmh,ho->nmo", h, w2.astype(jnp.float32))
    else:
        h = jnp.tanh(
            jnp.einsum("nmd,dh->nmh", z.astype(matmul_dtype), w1.astype(matmul_dtype),
                       preferred_element_type=jnp.float32) + b1)
        w = jnp.einsum("nmh,ho->nmo", h.astype(matmul_dtype), w2.astype(matmul_dtype),
                       preferred_element_type=jnp.float32)
    beta = jax.nn.softmax(w, axis=1)                      # softmax over dim=1 (per row)
    return jnp.sum(beta * zf, axis=1)                     # (N, D)


if __name__ == "__main__":
    # N rows (non-multiple of the tile to exercise the ragged last block), M=4 views,
    # in_size=32, hidden=32.
    N, M, D, H = 300, 4, 32, 32
    key = jax.random.PRNGKey(0)
    kz, kw1, kb1, kw2 = jax.random.split(key, 4)

    z = jax.random.normal(kz, (N, M, D), dtype=jnp.float32)
    w1 = jax.random.normal(kw1, (D, H), dtype=jnp.float32) * (1.0 / jnp.sqrt(D))
    b1 = jax.random.normal(kb1, (H,), dtype=jnp.float32) * 0.01
    w2 = jax.random.normal(kw2, (H, 1), dtype=jnp.float32) * (1.0 / jnp.sqrt(H))

    # --- f32-streamed path (tile_n=128 here just to get a multi-tile grid at demo scale;
    #     use the 2048 default / sweep 2048-8192 at real N). ------------------------------
    out = jax.block_until_ready(semantic_attention(z, w1, b1, w2, tile_n=128))
    assert out.shape == (N, D)

    ref_mixed = semantic_attention_ref(z, w1, b1, w2, matmul_dtype=jnp.bfloat16)
    ref_f32 = semantic_attention_ref(z, w1, b1, w2)
    # Tight structural check vs a reference with identical bf16 matmul rounding.
    assert jnp.allclose(out, ref_mixed, atol=5e-3, rtol=5e-3), (
        f"kernel vs matched-precision ref, max|diff|={float(jnp.max(jnp.abs(out - ref_mixed)))}")
    # End-to-end numerics vs the pure-f32 PyTorch-equivalent (loose: bf16 matmul operands).
    assert jnp.allclose(out, ref_f32, atol=5e-2, rtol=5e-2), (
        f"kernel vs f32 ref, max|diff|={float(jnp.max(jnp.abs(out - ref_f32)))}")

    # --- bf16-streamed path (halves the dominant z HBM stream; f32 accumulation). --------
    z_bf16 = z.astype(jnp.bfloat16)
    out_bf = jax.block_until_ready(semantic_attention(z_bf16, w1, b1, w2, tile_n=128))
    ref_bf = semantic_attention_ref(z_bf16, w1, b1, w2, matmul_dtype=jnp.bfloat16)
    assert jnp.allclose(out_bf.astype(jnp.float32), ref_bf, atol=2e-2, rtol=2e-2), (
        f"bf16-streamed kernel vs matched ref, "
        f"max|diff|={float(jnp.max(jnp.abs(out_bf.astype(jnp.float32) - ref_bf)))}")

    print("KERNEL_OK")
</pallas_src>

<mosaic_0001>
module attributes {stable_mosaic.version = 11 : i64} {
  func.func @semantic_attn_kernel(%arg0: i32, %arg1: memref<128x128xf32, #tpu.memory_space<vmem>>, %arg2: memref<128x128xbf16, #tpu.memory_space<vmem>>, %arg3: memref<1x128xf32, #tpu.memory_space<vmem>>, %arg4: memref<128x128xbf16, #tpu.memory_space<vmem>>, %arg5: memref<128x32xf32, #tpu.memory_space<vmem>>) attributes {dimension_semantics = [#tpu.dimension_semantics<parallel>], iteration_bounds = array<i64: 3>, scalar_prefetch = 0 : i64, scratch_operands = 0 : i64, tpu.core_type = #tpu.core_type<tc>, window_params = [{transform_indices = @transform_0, window_bounds = array<i64: 128, 128>}, {pipeline_mode = #tpu.pipeline_mode<synchronous>, transform_indices = @transform_1, window_bounds = array<i64: 128, 128>}, {pipeline_mode = #tpu.pipeline_mode<synchronous>, transform_indices = @transform_2, window_bounds = array<i64: 1, 128>}, {pipeline_mode = #tpu.pipeline_mode<synchronous>, transform_indices = @transform_3, window_bounds = array<i64: 128, 128>}, {transform_indices = @transform_4, window_bounds = array<i64: 128, 32>}]} {
    %c0 = arith.constant 0 : index
    %c0_0 = arith.constant 0 : index
    %0 = vector.load %arg1[%c0, %c0_0] : memref<128x128xf32, #tpu.memory_space<vmem>>, vector<128x128xf32>
    %1 = arith.truncf %0 : vector<128x128xf32> to vector<128x128xbf16>
    %c0_1 = arith.constant 0 : index
    %c0_2 = arith.constant 0 : index
    %2 = vector.load %arg2[%c0_1, %c0_2] : memref<128x128xbf16, #tpu.memory_space<vmem>>, vector<128x128xbf16>
    %cst = arith.constant dense<0.000000e+00> : vector<128x128xf32>
    %3 = tpu.matmul %1, %2, %cst {dimension_numbers = #tpu.dot_dimension_numbers<[1], [0], [0], [1], [0, 0, 1, 1], [], []>} : vector<128x128xbf16>, vector<128x128xbf16>, vector<128x128xf32> -> vector<128x128xf32>
    %c0_3 = arith.constant 0 : index
    %c0_4 = arith.constant 0 : index
    %4 = vector.load %arg3[%c0_3, %c0_4] : memref<1x128xf32, #tpu.memory_space<vmem>>, vector<1x128xf32>
    %5 = vector.broadcast %4 : vector<1x128xf32> to vector<128x128xf32>
    %6 = arith.addf %3, %5 : vector<128x128xf32>
    %7 = math.tanh %6 : vector<128x128xf32>
    %8 = arith.truncf %7 : vector<128x128xf32> to vector<128x128xbf16>
    %c0_5 = arith.constant 0 : index
    %c0_6 = arith.constant 0 : index
    %9 = vector.load %arg4[%c0_5, %c0_6] : memref<128x128xbf16, #tpu.memory_space<vmem>>, vector<128x128xbf16>
    %cst_7 = arith.constant dense<0.000000e+00> : vector<128x128xf32>
    %10 = tpu.matmul %8, %9, %cst_7 {dimension_numbers = #tpu.dot_dimension_numbers<[1], [0], [0], [1], [0, 0, 1, 1], [], []>} : vector<128x128xbf16>, vector<128x128xbf16>, vector<128x128xf32> -> vector<128x128xf32>
    %c32_i32 = arith.constant 32 : i32
    %11 = tpu.dynamic_rotate %10 by %c32_i32 dim 1 : vector<128x128xf32>, i32 -> vector<128x128xf32>
    %12 = arith.maximumf %10, %11 : vector<128x128xf32>
    %c64_i32 = arith.constant 64 : i32
    %13 = tpu.dynamic_rotate %12 by %c64_i32 dim 1 : vector<128x128xf32>, i32 -> vector<128x128xf32>
    %14 = arith.maximumf %12, %13 : vector<128x128xf32>
    %15 = arith.subf %10, %14 : vector<128x128xf32>
    %16 = math.exp %15 : vector<128x128xf32>
    %c32_i32_8 = arith.constant 32 : i32
    %17 = tpu.dynamic_rotate %16 by %c32_i32_8 dim 1 : vector<128x128xf32>, i32 -> vector<128x128xf32>
    %18 = arith.addf %16, %17 : vector<128x128xf32>
    %c64_i32_9 = arith.constant 64 : i32
    %19 = tpu.dynamic_rotate %18 by %c64_i32_9 dim 1 : vector<128x128xf32>, i32 -> vector<128x128xf32>
    %20 = arith.addf %18, %19 : vector<128x128xf32>
    %21 = tpu.reciprocal %20 : vector<128x128xf32> -> vector<128x128xf32>
    %22 = arith.mulf %16, %21 : vector<128x128xf32>
    %23 = arith.mulf %22, %0 : vector<128x128xf32>
    %c32_i32_10 = arith.constant 32 : i32
    %24 = tpu.dynamic_rotate %23 by %c32_i32_10 dim 1 : vector<128x128xf32>, i32 -> vector<128x128xf32>
    %25 = arith.addf %23, %24 : vector<128x128xf32>
    %c64_i32_11 = arith.constant 64 : i32
    %26 = tpu.dynamic_rotate %25 by %c64_i32_11 dim 1 : vector<128x128xf32>, i32 -> vector<128x128xf32>
    %27 = arith.addf %25, %26 : vector<128x128xf32>
    %28 = vector.extract_strided_slice %27 {offsets = [0, 0], sizes = [128, 32], strides = [1, 1]} : vector<128x128xf32> to vector<128x32xf32>
    %c0_12 = arith.constant 0 : index
    %c0_13 = arith.constant 0 : index
    %29 = vector.load %arg5[%c0_12, %c0_13] : memref<128x32xf32, #tpu.memory_space<vmem>>, vector<128x32xf32>
    tpu.vector_store %arg5[%c0_12, %c0_13], %28 {strides = array<i32>} : memref<128x32xf32, #tpu.memory_space<vmem>>, vector<128x32xf32>,
    return
  }
  func.func @transform_0(%arg0: i32) -> (i32, i32) {
    %c0_i32 = arith.constant 0 : i32
    %c0_i32_0 = arith.constant 0 : i32
    return %arg0, %c0_i32 : i32, i32
  }
  func.func @transform_1(%arg0: i32) -> (i32, i32) {
    %c0_i32 = arith.constant 0 : i32
    %c0_i32_0 = arith.constant 0 : i32
    %c0_i32_1 = arith.constant 0 : i32
    return %c0_i32, %c0_i32_0 : i32, i32
  }
  func.func @transform_2(%arg0: i32) -> (i32, i32) {
    %c0_i32 = arith.constant 0 : i32
    %c0_i32_0 = arith.constant 0 : i32
    %c0_i32_1 = arith.constant 0 : i32
    return %c0_i32, %c0_i32_0 : i32, i32
  }
  func.func @transform_3(%arg0: i32) -> (i32, i32) {
    %c0_i32 = arith.constant 0 : i32
    %c0_i32_0 = arith.constant 0 : i32
    %c0_i32_1 = arith.constant 0 : i32
    return %c0_i32, %c0_i32_0 : i32, i32
  }
  func.func @transform_4(%arg0: i32) -> (i32, i32) {
    %c0_i32 = arith.constant 0 : i32
    %c0_i32_0 = arith.constant 0 : i32
    return %arg0, %c0_i32 : i32, i32
  }
}

</mosaic_0001>

<llo_original>
// kernel: tpu_custom_call.1
$region0: #{tpu_custom_call.1}
  #allocation0 [shape = 'u32[]', space=smem, size = 0x4, offset = 0x4, fixed_abs, tag = 'smem constant byte address 0x4 - core index']
  #allocation1 [shape = 'u32[144,128]{1,0:T(1,128)}', space=vmem, size = 0x12000, scoped, tag = 'internal scratch']
  %s0 = inlined_call_operand.hbm [shape: f32[300,128], index: 0, kind: input, shape index: {}]
  %s1 = inlined_call_operand.hbm [shape: bf16[128,128], index: 1, kind: input, shape index: {}]
  %s2 = inlined_call_operand.vmem [shape: f32[1,128], index: 2, kind: input, shape index: {}]
  %s3 = inlined_call_operand.hbm [shape: bf16[128,128], index: 3, kind: input, shape index: {}]
  %s4 = inlined_call_operand.vmem [shape: f32[300,32], index: 4, kind: output, shape index: {}]
  %s5 = sld [smem:[#allocation0]]
  $region109: #{tpu_custom_call.1} parent=0
    _
  %s7 = ssub.s32 1, %s5
  %s8 = scalar_select 0, %s7, %s5
  $region1: #{tpu_custom_call.1} parent=0
    #allocation2 [shape = 'u8[131072]{0}', space=vmem, size = 0x20000, scoped, tag = 'input window, operand 0']
    #allocation3 [shape = 's32[2]{0}', space=sflag, size = 0x8, scoped, tag = 'scoped memory for tpu_custom_call.1']
    #allocation4 [shape = 'u8[32768]{0}', space=vmem, size = 0x8000, scoped, tag = 'input window, operand 1, single buffered']
    #allocation5 [shape = 's32[1]{0}', space=sflag, size = 0x4, scoped, tag = 'scoped memory for tpu_custom_call.1']
    #allocation6 [shape = 'u8[32768]{0}', space=vmem, size = 0x8000, scoped, tag = 'input window, operand 3, single buffered']
    #allocation7 [shape = 'u8[131072]{0}', space=vmem, size = 0x20000, scoped, tag = 'output window, operand 0']
    %9 = vsyncpa [#allocation3], 0
    %s10 = scalar_lea.sflag [#allocation3], 1
    %11 = vsyncpa %s10, 0
    %12 = vsyncpa [#allocation5], 0
    loop: start=0, step=1, limit=5
    $region2: #{tpu_custom_call.1} parent=1 // loop_pre_header
      _
    $region3: #{tpu_custom_call.1} parent=1 // loop_header
      %s14 = sphi 0, %s18
      %p15 = scmp.ge.s32.totalorder %s14, 5
      %s24 = sphi 0, %s26
      %s27 = sphi 0, %s24
      %s28 = sphi 0, %s27
      %s44 = sphi 0, %s28
      %s48 = sphi 0, %s48
      %s50 = sphi 0, %s48
      %s51 = sphi 0, %s50
      %s65 = sphi 0, %s51
      %s69 = sphi 0, %s69
      %s71 = sphi 0, %s69
      %s72 = sphi 0, %s71
      %s86 = sphi 0, %s72
      %s90 = sphi 0, %s90
      %s92 = sphi 0, %s90
      %s93 = sphi 0, %s92
      %s107 = sphi 0, %s93
      %s113 = sphi 0, %s115
      %s116 = sphi 0, %s113
      %s117 = sphi 0, %s116
      %s133 = sphi 0, %s117
    $region4: #{tpu_custom_call.1} parent=1 // loop_header_branch
      %17 = sbr.rel (%p15) target = $region8
    $region5: #{tpu_custom_call.1} parent=1 // loop_body
      %s19 = ssub.s32 %s14, 1
      %s20 = ssub.s32 %s14, 2
      %s21 = sadd.s32 %s14, 1
      %s22 = ssub.s32 %s14, %s21
      %p23 = scmp.eq.s32.totalorder %s22, 0
      %s25 = sadd.s32 %s24, 1
      %s26 = scalar_select %p23, %s24, %s25
      %p29 = pneg %p23
      %p30 = scmp.eq.s32.totalorder %s14, 2
      %p31 = por %p29, %p30
      %p32 = scmp.ne.s32.totalorder %s24, %s27
      %p33 = scmp.eq.s32.totalorder %s14, 0
      %p34 = por %p32, %p33
      %p35 = scmp.ne.s32.totalorder %s24, %s27
      %p36 = scmp.eq.s32.totalorder %s19, 2
      %p37 = por %p35, %p36
      %p38 = scmp.ne.s32.totalorder %s27, %s28
      %p39 = scmp.eq.s32.totalorder %s19, 0
      %p40 = por %p38, %p39
      %p41 = scmp.ne.s32.totalorder %s27, %s28
      %p42 = scmp.eq.s32.totalorder %s20, 2
      %p43 = por %p41, %p42
      %p45 = scmp.ne.s32.totalorder %s28, %s44
      %p46 = scmp.eq.s32.totalorder %s20, 0
      %p47 = por %p45, %p46
      %s49 = sadd.s32 %s48, 1
      %p52 = scmp.eq.s32.totalorder %s14, 2
      %p53 = scmp.ne.s32.totalorder %s48, %s50
      %p54 = scmp.eq.s32.totalorder %s14, 0
      %p55 = por %p53, %p54
      %p56 = scmp.ne.s32.totalorder %s48, %s50
      %p57 = scmp.eq.s32.totalorder %s19, 2
      %p58 = por %p56, %p57
      %p59 = scmp.ne.s32.totalorder %s50, %s51
      %p60 = scmp.eq.s32.totalorder %s19, 0
      %p61 = por %p59, %p60
      %p62 = scmp.ne.s32.totalorder %s50, %s51
      %p63 = scmp.eq.s32.totalorder %s20, 2
      %p64 = por %p62, %p63
      %p66 = scmp.ne.s32.totalorder %s51, %s65
      %p67 = scmp.eq.s32.totalorder %s20, 0
      %p68 = por %p66, %p67
      %s70 = sadd.s32 %s69, 1
      %p73 = scmp.eq.s32.totalorder %s14, 2
      %p74 = scmp.ne.s32.totalorder %s69, %s71
      %p75 = scmp.eq.s32.totalorder %s14, 0
      %p76 = por %p74, %p75
      %p77 = scmp.ne.s32.totalorder %s69, %s71
      %p78 = scmp.eq.s32.totalorder %s19, 2
      %p79 = por %p77, %p78
      %p80 = scmp.ne.s32.totalorder %s71, %s72
      %p81 = scmp.eq.s32.totalorder %s19, 0
      %p82 = por %p80, %p81
      %p83 = scmp.ne.s32.totalorder %s71, %s72
      %p84 = scmp.eq.s32.totalorder %s20, 2
      %p85 = por %p83, %p84
      %p87 = scmp.ne.s32.totalorder %s72, %s86
      %p88 = scmp.eq.s32.totalorder %s20, 0
      %p89 = por %p87, %p88
      %s91 = sadd.s32 %s90, 1
      %p94 = scmp.eq.s32.totalorder %s14, 2
      %p95 = scmp.ne.s32.totalorder %s90, %s92
      %p96 = scmp.eq.s32.totalorder %s14, 0
      %p97 = por %p95, %p96
      %p98 = scmp.ne.s32.totalorder %s90, %s92
      %p99 = scmp.eq.s32.totalorder %s19, 2
      %p100 = por %p98, %p99
      %p101 = scmp.ne.s32.totalorder %s92, %s93
      %p102 = scmp.eq.s32.totalorder %s19, 0
      %p103 = por %p101, %p102
      %p104 = scmp.ne.s32.totalorder %s92, %s93
      %p105 = scmp.eq.s32.totalorder %s20, 2
      %p106 = por %p104, %p105
      %p108 = scmp.ne.s32.totalorder %s93, %s107
      %p109 = scmp.eq.s32.totalorder %s20, 0
      %p110 = por %p108, %p109
      %s111 = ssub.s32 %s14, %s21
      %p112 = scmp.eq.s32.totalorder %s111, 0
      %s114 = sadd.s32 %s113, 1
      %s115 = scalar_select %p112, %s113, %s114
      %p118 = pneg %p112
      %p119 = scmp.eq.s32.totalorder %s14, 2
      %p120 = por %p118, %p119
      %p121 = scmp.ne.s32.totalorder %s113, %s116
      %p122 = scmp.eq.s32.totalorder %s14, 0
      %p123 = por %p121, %p122
      %p124 = scmp.ne.s32.totalorder %s113, %s116
      %p125 = scmp.eq.s32.totalorder %s19, 2
      %p126 = por %p124, %p125
      %p127 = scmp.ne.s32.totalorder %s116, %s117
      %p128 = scmp.eq.s32.totalorder %s19, 0
      %p129 = por %p127, %p128
      %p130 = scmp.ne.s32.totalorder %s116, %s117
      %p131 = scmp.eq.s32.totalorder %s20, 2
      %p132 = por %p130, %p131
      %p134 = scmp.ne.s32.totalorder %s117, %s133
      %p135 = scmp.eq.s32.totalorder %s20, 0
      %p136 = por %p134, %p135
      %p137 = scmp.le.s32.totalorder 1, %s14
      %p138 = scmp.lt.s32.totalorder %s14, 4
      %p139 = pnand %p137, %p138
      %p140 = pneg %p139
      // Predicated region
      $region9: #{tpu_custom_call.1} parent=5 // pred_check
        _
      $region10: #{tpu_custom_call.1} parent=5 // pred_check_branch
        %142 = sbr.rel (%p139) target = $region12
      $region11: #{tpu_custom_call.1} parent=5 // pred_region
        %s143 = ssub.s32 %s14, 1
        // Predicated region
        $region13: #{tpu_custom_call.1} parent=11 // pred_check
          %p144 = pneg %p61
        $region14: #{tpu_custom_call.1} parent=11 // pred_check_branch
          %146 = sbr.rel (%p144) target = $region16
        $region15: #{tpu_custom_call.1} parent=11 // pred_region
          %s148 = ssub.s32 1024, 1024
          %149 = vsyncadd [#allocation5], %s148
          %s150 = sshll.u32 [#allocation4], 4
          %s151 = int_to_ptr.vmem [resolvable:$true] %s150
          %156 = dma.hbm_to_vmem [thread:$0]  %s1, 1024, %s151, [#allocation5], 64, 64, 4
        $region16: #{tpu_custom_call.1} parent=11 // pred_fallthru
          _
        // Predicated region
        $region17: #{tpu_custom_call.1} parent=11 // pred_check
          %p157 = pneg %p82
        $region18: #{tpu_custom_call.1} parent=11 // pred_check_branch
          %159 = sbr.rel (%p157) target = $region20
        $region19: #{tpu_custom_call.1} parent=11 // pred_region
          _
        $region20: #{tpu_custom_call.1} parent=11 // pred_fallthru
          _
        // Predicated region
        $region21: #{tpu_custom_call.1} parent=11 // pred_check
          %p160 = pneg %p103
        $region22: #{tpu_custom_call.1} parent=11 // pred_check_branch
          %162 = sbr.rel (%p160) target = $region24
        $region23: #{tpu_custom_call.1} parent=11 // pred_region
          %s164 = ssub.s32 1024, 1024
          %165 = vsyncadd [#allocation5], %s164
          %s166 = sshll.u32 [#allocation6], 4
          %s167 = int_to_ptr.vmem [resolvable:$true] %s166
          %172 = dma.hbm_to_vmem [thread:$0]  %s3, 1024, %s167, [#allocation5], 64, 64, 4
        $region24: #{tpu_custom_call.1} parent=11 // pred_fallthru
          _
      $region12: #{tpu_custom_call.1} parent=5 // pred_fallthru
        _
      %p173 = scmp.lt.s32.totalorder %s14, 3
      // Predicated region
      $region25: #{tpu_custom_call.1} parent=5 // pred_check
        %p174 = pneg %p173
      $region26: #{tpu_custom_call.1} parent=5 // pred_check_branch
        %176 = sbr.rel (%p174) target = $region28
      $region27: #{tpu_custom_call.1} parent=5 // pred_region
        // Predicated region
        $region29: #{tpu_custom_call.1} parent=27 // pred_check
          %p177 = pneg %p34
        $region30: #{tpu_custom_call.1} parent=27 // pred_check_branch
          %179 = sbr.rel (%p177) target = $region32
        $region31: #{tpu_custom_call.1} parent=27 // pred_region
          %s180 = sand.u32 %s24, 1
          %s181 = scalar_lea.sflag [#allocation3], %s180
          %s182 = sand.u32 %s24, 1
          %s183 = smul.addr %s182, 128
          %s184 = scalar_lea.vmem [#allocation2], %s183
          %s185 = smul.u32 16, %s14
          %s186 = ssub.s32 38, %s185
          %p187 = scmp.lt.s32.totalorder %s186, 16
          %s188 = scalar_select %p187, %s186, 16
          %s189 = smul.u32 128, %s188
          %s191 = ssub.s32 2048, %s189
          %192 = vsyncadd %s181, %s191
          %p193 = scmp.ne.s32.totalorder 0, %s189
          %s194 = smul.addr %s185, 128
          %s195 = scalar_lea.hbm %s0, %s194
          %s196 = smul.u32 8, %s188
          %s197 = sshll.u32 %s184, 4
          %s198 = int_to_ptr.vmem [resolvable:$true] %s197
          %s199 = sshll.u32 %s196, 4
          %203 = dma.hbm_to_vmem [thread:$0]  (%p193), %s195, %s199, %s198, %s181, 128, 128, 8
        $region32: #{tpu_custom_call.1} parent=27 // pred_fallthru
          _
      $region28: #{tpu_custom_call.1} parent=5 // pred_fallthru
        _
      %p204 = scmp.le.s32.totalorder 1, %s14
      %p205 = scmp.lt.s32.totalorder %s14, 4
      %p206 = pnand %p204, %p205
      %p207 = pneg %p206
      // Predicated region
      $region33: #{tpu_custom_call.1} parent=5 // pred_check
        _
      $region34: #{tpu_custom_call.1} parent=5 // pred_check_branch
        %209 = sbr.rel (%p206) target = $region36
      $region35: #{tpu_custom_call.1} parent=5 // pred_region
        %s210 = ssub.s32 %s14, 1
        %s211 = sand.u32 %s27, 1
        %s212 = scalar_lea.sflag [#allocation3], %s211
        %s213 = sand.u32 %s27, 1
        %s214 = smul.addr %s213, 128
        %s215 = scalar_lea.vmem [#allocation2], %s214
        // Predicated region
        $region37: #{tpu_custom_call.1} parent=35 // pred_check
          %p216 = pneg %p40
        $region38: #{tpu_custom_call.1} parent=35 // pred_check_branch
          %218 = sbr.rel (%p216) target = $region40
        $region39: #{tpu_custom_call.1} parent=35 // pred_region
          %219 = dma.done %s212, 2048
        $region40: #{tpu_custom_call.1} parent=35 // pred_fallthru
          _
        // Predicated region
        $region41: #{tpu_custom_call.1} parent=35 // pred_check
          %p220 = pneg %p61
        $region42: #{tpu_custom_call.1} parent=35 // pred_check_branch
          %222 = sbr.rel (%p220) target = $region44
        $region43: #{tpu_custom_call.1} parent=35 // pred_region
          %223 = dma.done [#allocation5], 1024
        $region44: #{tpu_custom_call.1} parent=35 // pred_fallthru
          _
        // Predicated region
        $region45: #{tpu_custom_call.1} parent=35 // pred_check
          %p224 = pneg %p103
        $region46: #{tpu_custom_call.1} parent=35 // pred_check_branch
          %226 = sbr.rel (%p224) target = $region48
        $region47: #{tpu_custom_call.1} parent=35 // pred_region
          %227 = dma.done [#allocation5], 1024
        $region48: #{tpu_custom_call.1} parent=35 // pred_fallthru
          _
        %s228 = sand.u32 %s27, 1
        %s229 = scalar_lea.sflag [#allocation3], %s228
        %s230 = sand.u32 %s27, 1
        %s231 = smul.addr %s230, 128
        %s232 = scalar_lea.vmem [#allocation2], %s231
        %p233 = pneg %p40
        %p234 = pneg %p37
        %p235 = pneg %p61
        %p236 = pneg %p58
        %p237 = pneg %p82
        %p238 = pneg %p79
        %p239 = pneg %p103
        %p240 = pneg %p100
        %p241 = pneg %p129
        %p242 = pneg %p126
        %s243 = sand.u32 %s116, 1
        %s244 = sand.u32 %s116, 1
        %s245 = smul.addr %s244, 128
        %s246 = scalar_lea.vmem [#allocation7], %s245
        %s247 = smul.u32 16, %s19
        %s248 = ssub.s32 38, %s247
        %p249 = scmp.lt.s32.totalorder %s248, 16
        %s250 = scalar_select %p249, %s248, 16
        %s251 = smul.u32 128, %s250
        %s252 = smul.u32 16, %s19
        %s253 = ssub.s32 38, %s252
        %p254 = scmp.lt.s32.totalorder %s253, 16
        %s255 = scalar_select %p254, %s253, 16
        %s256 = smul.u32 128, %s255
        %v258 = vld [vmem:[%s215] sm:$0xff]
        %v259 = vld [vmem:[%s215 + $0x8] sm:$0xff]
        %v260 = vld [vmem:[%s215 + $0x10] sm:$0xff]
        %v261 = vld [vmem:[%s215 + $0x18] sm:$0xff]
        %v262 = vld [vmem:[%s215 + $0x20] sm:$0xff]
        %v263 = vld [vmem:[%s215 + $0x28] sm:$0xff]
        %v264 = vld [vmem:[%s215 + $0x30] sm:$0xff]
        %v265 = vld [vmem:[%s215 + $0x38] sm:$0xff]
        %v266 = vld [vmem:[%s215 + $0x40] sm:$0xff]
        %v267 = vld [vmem:[%s215 + $0x48] sm:$0xff]
        %v268 = vld [vmem:[%s215 + $0x50] sm:$0xff]
        %v269 = vld [vmem:[%s215 + $0x58] sm:$0xff]
        %v270 = vld [vmem:[%s215 + $0x60] sm:$0xff]
        %v271 = vld [vmem:[%s215 + $0x68] sm:$0xff]
        %v272 = vld [vmem:[%s215 + $0x70] sm:$0xff]
        %v273 = vld [vmem:[%s215 + $0x78] sm:$0xff]
        %v274 = vpack.c.bf16 %v259, %v258
        %v275 = vpack.c.bf16 %v261, %v260
        %v276 = vpack.c.bf16 %v263, %v262
        %v277 = vpack.c.bf16 %v265, %v264
        %v278 = vpack.c.bf16 %v267, %v266
        %v279 = vpack.c.bf16 %v269, %v268
        %v280 = vpack.c.bf16 %v271, %v270
        %v281 = vpack.c.bf16 %v273, %v272
        %v282 = vld [vmem:[#allocation4] sm:$0xf]
        %v283 = vld [vmem:[#allocation4 + $0x4] sm:$0xf]
        %v284 = vld [vmem:[#allocation4 + $0x8] sm:$0xf]
        %v285 = vld [vmem:[#allocation4 + $0xc] sm:$0xf]
        %v286 = vld [vmem:[#allocation4 + $0x10] sm:$0xf]
        %v287 = vld [vmem:[#allocation4 + $0x14] sm:$0xf]
        %v288 = vld [vmem:[#allocation4 + $0x18] sm:$0xf]
        %v289 = vld [vmem:[#allocation4 + $0x1c] sm:$0xf]
        %v290 = vld [vmem:[#allocation4 + $0x20] sm:$0xf]
        %v291 = vld [vmem:[#allocation4 + $0x24] sm:$0xf]
        %v292 = vld [vmem:[#allocation4 + $0x28] sm:$0xf]
        %v293 = vld [vmem:[#allocation4 + $0x2c] sm:$0xf]
        %v294 = vld [vmem:[#allocation4 + $0x30] sm:$0xf]
        %v295 = vld [vmem:[#allocation4 + $0x34] sm:$0xf]
        %v296 = vld [vmem:[#allocation4 + $0x38] sm:$0xf]
        %v297 = vld [vmem:[#allocation4 + $0x3c] sm:$0xf]
        %v298 = vld [vmem:[%s2] sm:$0x1]
        %v300 = vlaneseq
        %v301 = vshrl.u32 %v300, 7
        %v302 = vsub.s32 0, %v301
        %v303 = vrot.slane %v298, %v302
        %v321 = vunpack.c.l.b16 %v282
        %v322 = vunpack.c.l.b16 %v283
        %v323 = vunpack.c.l.b16 %v284
        %v324 = vunpack.c.l.b16 %v285
        %v325 = vunpack.c.l.b16 %v286
        %v326 = vunpack.c.l.b16 %v287
        %v327 = vunpack.c.l.b16 %v288
        %v328 = vunpack.c.l.b16 %v289
        %v329 = vunpack.c.l.b16 %v290
        %v330 = vunpack.c.l.b16 %v291
        %v331 = vunpack.c.l.b16 %v292
        %v332 = vunpack.c.l.b16 %v293
        %v333 = vunpack.c.l.b16 %v294
        %v334 = vunpack.c.l.b16 %v295
        %v335 = vunpack.c.l.b16 %v296
        %v336 = vunpack.c.l.b16 %v297
        %v337 = vpack.c.b16 %v322, %v321
        %v338 = vpack.c.b16 %v324, %v323
        %v339 = vpack.c.b16 %v326, %v325
        %v340 = vpack.c.b16 %v328, %v327
        %v341 = vpack.c.b16 %v330, %v329
        %v342 = vpack.c.b16 %v332, %v331
        %v343 = vpack.c.b16 %v334, %v333
        %v344 = vpack.c.b16 %v336, %v335
        %353 = vmatprep.subr.bf16.mxu0 0
        %354 = vmatpush1.bf16.msra.mxu0 %v337
        %355 = vmatprep.subr.bf16.mxu0 0
        %356 = vmatpush1.bf16.msra.mxu0 %v338
        %357 = vmatprep.subr.bf16.mxu0 0
        %358 = vmatpush1.bf16.msra.mxu0 %v339
        %359 = vmatprep.subr.bf16.mxu0 0
        %360 = vmatpush1.bf16.msra.mxu0 %v340
        %361 = vmatprep.subr.bf16.mxu0 0
        %362 = vmatpush1.bf16.msra.mxu0 %v341
        %363 = vmatprep.subr.bf16.mxu0 0
        %364 = vmatpush1.bf16.msra.mxu0 %v342
        %365 = vmatprep.subr.bf16.mxu0 0
        %366 = vmatpush1.bf16.msra.mxu0 %v343
        %367 = vmatprep.subr.bf16.mxu0 0
        %368 = vmatpush1.bf16.msra.mxu0 %v344
        %369 = vmatprep.subr.bf16.mxu0 0
        %370 = vmatpush1.bf16.msra.mxu0 0
        %371 = vmatprep.subr.bf16.mxu0 0
        %372 = vmatpush1.bf16.msra.mxu0 0
        %373 = vmatprep.subr.bf16.mxu0 0
        %374 = vmatpush1.bf16.msra.mxu0 0
        %375 = vmatprep.subr.bf16.mxu0 0
        %376 = vmatpush1.bf16.msra.mxu0 0
        %377 = vmatprep.subr.bf16.mxu0 0
        %378 = vmatpush1.bf16.msra.mxu0 0
        %379 = vmatprep.subr.bf16.mxu0 0
        %380 = vmatpush1.bf16.msra.mxu0 0
        %381 = vmatprep.subr.bf16.mxu0 0
        %382 = vmatpush1.bf16.msra.mxu0 0
        %383 = vmatprep.subr.bf16.mxu0 0
        %384 = vmatpush1.bf16.msra.mxu0 0
        %385 = vmatprep.mubr.bf16.mxu0 0
        %386 = vmatmul.mubr.bf16.gmra.mrb[0].mxu0 %v274
        %v387 = vpop.f32.mrb[0].mxu0
        %v388 = vadd.f32 %v303, %v387
        %v389 = vpop.f32.mrb[0].mxu0
        %v390 = vpop.f32.mrb[0].mxu0
        %v391 = vadd.f32 %v303, %v390
        %v392 = vpop.f32.mrb[0].mxu0
        %393 = vmatprep.mubr.bf16.mxu0 0
        %394 = vmatmul.mubr.bf16.gmra.mrb[0].mxu0 %v275
        %v395 = vpop.f32.mrb[0].mxu0
        %v396 = vadd.f32 %v303, %v395
        %v397 = vpop.f32.mrb[0].mxu0
        %v398 = vpop.f32.mrb[0].mxu0
        %v399 = vadd.f32 %v303, %v398
        %v400 = vpop.f32.mrb[0].mxu0
        %401 = vmatprep.mubr.bf16.mxu0 0
        %402 = vmatmul.mubr.bf16.gmra.mrb[0].mxu0 %v276
        %v403 = vpop.f32.mrb[0].mxu0
        %v404 = vadd.f32 %v303, %v403
        %v405 = vpop.f32.mrb[0].mxu0
        %v406 = vpop.f32.mrb[0].mxu0
        %v407 = vadd.f32 %v303, %v406
        %v408 = vpop.f32.mrb[0].mxu0
        %409 = vmatprep.mubr.bf16.mxu0 0
        %410 = vmatmul.mubr.bf16.gmra.mrb[0].mxu0 %v277
        %v411 = vpop.f32.mrb[0].mxu0
        %v412 = vadd.f32 %v303, %v411
        %v413 = vpop.f32.mrb[0].mxu0
        %v414 = vpop.f32.mrb[0].mxu0
        %v415 = vadd.f32 %v303, %v414
        %v416 = vpop.f32.mrb[0].mxu0
        %417 = vmatprep.mubr.bf16.mxu0 0
        %418 = vmatmul.mubr.bf16.gmra.mrb[0].mxu0 %v278
        %v419 = vpop.f32.mrb[0].mxu0
        %v420 = vadd.f32 %v303, %v419
        %v421 = vpop.f32.mrb[0].mxu0
        %v422 = vpop.f32.mrb[0].mxu0
        %v423 = vadd.f32 %v303, %v422
        %v424 = vpop.f32.mrb[0].mxu0
        %425 = vmatprep.mubr.bf16.mxu0 0
        %426 = vmatmul.mubr.bf16.gmra.mrb[0].mxu0 %v279
        %v427 = vpop.f32.mrb[0].mxu0
        %v428 = vadd.f32 %v303, %v427
        %v429 = vpop.f32.mrb[0].mxu0
        %v430 = vpop.f32.mrb[0].mxu0
        %v431 = vadd.f32 %v303, %v430
        %v432 = vpop.f32.mrb[0].mxu0
        %433 = vmatprep.mubr.bf16.mxu0 0
        %434 = vmatmul.mubr.bf16.gmra.mrb[0].mxu0 %v280
        %v435 = vpop.f32.mrb[0].mxu0
        %v436 = vadd.f32 %v303, %v435
        %v437 = vpop.f32.mrb[0].mxu0
        %v438 = vpop.f32.mrb[0].mxu0
        %v439 = vadd.f32 %v303, %v438
        %v440 = vpop.f32.mrb[0].mxu0
        %441 = vmatprep.mubr.bf16.mxu0 0
        %442 = vmatmul.mubr.bf16.gmra.mrb[0].mxu0 %v281
        %v443 = vpop.f32.mrb[0].mxu0
        %v444 = vadd.f32 %v303, %v443
        %v445 = vpop.f32.mrb[0].mxu0
        %v446 = vpop.f32.mrb[0].mxu0
        %v447 = vadd.f32 %v303, %v446
        %v448 = vpop.f32.mrb[0].mxu0
        %449 = vdwg.mxu0
        %v450 = vtanh.pop %v388
        %v451 = vtanh.pop %v391
        %v452 = vtanh.pop %v396
        %v453 = vtanh.pop %v399
        %v454 = vtanh.pop %v404
        %v455 = vtanh.pop %v407
        %v456 = vtanh.pop %v412
        %v457 = vtanh.pop %v415
        %v458 = vtanh.pop %v420
        %v459 = vtanh.pop %v423
        %v460 = vtanh.pop %v428
        %v461 = vtanh.pop %v431
        %v462 = vtanh.pop %v436
        %v463 = vtanh.pop %v439
        %v464 = vtanh.pop %v444
        %v465 = vtanh.pop %v447
        %v466 = vpack.c.bf16 %v451, %v450
        %v467 = vpack.c.bf16 %v453, %v452
        %v468 = vpack.c.bf16 %v455, %v454
        %v469 = vpack.c.bf16 %v457, %v456
        %v470 = vpack.c.bf16 %v459, %v458
        %v471 = vpack.c.bf16 %v461, %v460
        %v472 = vpack.c.bf16 %v463, %v462
        %v473 = vpack.c.bf16 %v465, %v464
        %v474 = vld [vmem:[#allocation6] sm:$0xf]
        %v475 = vld [vmem:[#allocation6 + $0x4] sm:$0xf]
        %v476 = vld [vmem:[#allocation6 + $0x8] sm:$0xf]
        %v477 = vld [vmem:[#allocation6 + $0xc] sm:$0xf]
        %v478 = vld [vmem:[#allocation6 + $0x10] sm:$0xf]
        %v479 = vld [vmem:[#allocation6 + $0x14] sm:$0xf]
        %v480 = vld [vmem:[#allocation6 + $0x18] sm:$0xf]
        %v481 = vld [vmem:[#allocation6 + $0x1c] sm:$0xf]
        %v482 = vld [vmem:[#allocation6 + $0x20] sm:$0xf]
        %v483 = vld [vmem:[#allocation6 + $0x24] sm:$0xf]
        %v484 = vld [vmem:[#allocation6 + $0x28] sm:$0xf]
        %v485 = vld [vmem:[#allocation6 + $0x2c] sm:$0xf]
        %v486 = vld [vmem:[#allocation6 + $0x30] sm:$0xf]
        %v487 = vld [vmem:[#allocation6 + $0x34] sm:$0xf]
        %v488 = vld [vmem:[#allocation6 + $0x38] sm:$0xf]
        %v489 = vld [vmem:[#allocation6 + $0x3c] sm:$0xf]
        %v506 = vunpack.c.l.b16 %v474
        %v507 = vunpack.c.l.b16 %v475
        %v508 = vunpack.c.l.b16 %v476
        %v509 = vunpack.c.l.b16 %v477
        %v510 = vunpack.c.l.b16 %v478
        %v511 = vunpack.c.l.b16 %v479
        %v512 = vunpack.c.l.b16 %v480
        %v513 = vunpack.c.l.b16 %v481
        %v514 = vunpack.c.l.b16 %v482
        %v515 = vunpack.c.l.b16 %v483
        %v516 = vunpack.c.l.b16 %v484
        %v517 = vunpack.c.l.b16 %v485
        %v518 = vunpack.c.l.b16 %v486
        %v519 = vunpack.c.l.b16 %v487
        %v520 = vunpack.c.l.b16 %v488
        %v521 = vunpack.c.l.b16 %v489
        %v522 = vpack.c.b16 %v507, %v506
        %v523 = vpack.c.b16 %v509, %v508
        %v524 = vpack.c.b16 %v511, %v510
        %v525 = vpack.c.b16 %v513, %v512
        %v526 = vpack.c.b16 %v515, %v514
        %v527 = vpack.c.b16 %v517, %v516
        %v528 = vpack.c.b16 %v519, %v518
        %v529 = vpack.c.b16 %v521, %v520
        %538 = vmatprep.subr.bf16.mxu0 0
        %539 = vmatpush1.bf16.msra.mxu0 %v522
        %540 = vmatprep.subr.bf16.mxu0 0
        %541 = vmatpush1.bf16.msra.mxu0 %v523
        %542 = vmatprep.subr.bf16.mxu0 0
        %543 = vmatpush1.bf16.msra.mxu0 %v524
        %544 = vmatprep.subr.bf16.mxu0 0
        %545 = vmatpush1.bf16.msra.mxu0 %v525
        %546 = vmatprep.subr.bf16.mxu0 0
        %547 = vmatpush1.bf16.msra.mxu0 %v526
        %548 = vmatprep.subr.bf16.mxu0 0
        %549 = vmatpush1.bf16.msra.mxu0 %v527
        %550 = vmatprep.subr.bf16.mxu0 0
        %551 = vmatpush1.bf16.msra.mxu0 %v528
        %552 = vmatprep.subr.bf16.mxu0 0
        %553 = vmatpush1.bf16.msra.mxu0 %v529
        %554 = vmatprep.subr.bf16.mxu0 0
        %555 = vmatpush1.bf16.msra.mxu0 0
        %556 = vmatprep.subr.bf16.mxu0 0
        %557 = vmatpush1.bf16.msra.mxu0 0
        %558 = vmatprep.subr.bf16.mxu0 0
        %559 = vmatpush1.bf16.msra.mxu0 0
        %560 = vmatprep.subr.bf16.mxu0 0
        %561 = vmatpush1.bf16.msra.mxu0 0
        %562 = vmatprep.subr.bf16.mxu0 0
        %563 = vmatpush1.bf16.msra.mxu0 0
        %564 = vmatprep.subr.bf16.mxu0 0
        %565 = vmatpush1.bf16.msra.mxu0 0
        %566 = vmatprep.subr.bf16.mxu0 0
        %567 = vmatpush1.bf16.msra.mxu0 0
        %568 = vmatprep.subr.bf16.mxu0 0
        %569 = vmatpush1.bf16.msra.mxu0 0
        %570 = vmatprep.mubr.bf16.mxu0 0
        %571 = vmatmul.mubr.bf16.gmra.mrb[0].mxu0 %v466
        %v572 = vpop.f32.mrb[0].mxu0
        %v573 = vadd.f32 0.0, %v572
        %v574 = vpop.f32.mrb[0].mxu0
        %v575 = vpop.f32.mrb[0].mxu0
        %v576 = vadd.f32 0.0, %v575
        %v577 = vpop.f32.mrb[0].mxu0
        %578 = vmatprep.mubr.bf16.mxu0 0
        %579 = vmatmul.mubr.bf16.gmra.mrb[0].mxu0 %v467
        %v580 = vpop.f32.mrb[0].mxu0
        %v581 = vadd.f32 0.0, %v580
        %v582 = vpop.f32.mrb[0].mxu0
        %v583 = vpop.f32.mrb[0].mxu0
        %v584 = vadd.f32 0.0, %v583
        %v585 = vpop.f32.mrb[0].mxu0
        %586 = vmatprep.mubr.bf16.mxu0 0
        %587 = vmatmul.mubr.bf16.gmra.mrb[0].mxu0 %v468
        %v588 = vpop.f32.mrb[0].mxu0
        %v589 = vadd.f32 0.0, %v588
        %v590 = vpop.f32.mrb[0].mxu0
        %v591 = vpop.f32.mrb[0].mxu0
        %v592 = vadd.f32 0.0, %v591
        %v593 = vpop.f32.mrb[0].mxu0
        %594 = vmatprep.mubr.bf16.mxu0 0
        %595 = vmatmul.mubr.bf16.gmra.mrb[0].mxu0 %v469
        %v596 = vpop.f32.mrb[0].mxu0
        %v597 = vadd.f32 0.0, %v596
        %v598 = vpop.f32.mrb[0].mxu0
        %v599 = vpop.f32.mrb[0].mxu0
        %v600 = vadd.f32 0.0, %v599
        %v601 = vpop.f32.mrb[0].mxu0
        %602 = vmatprep.mubr.bf16.mxu0 0
        %603 = vmatmul.mubr.bf16.gmra.mrb[0].mxu0 %v470
        %v604 = vpop.f32.mrb[0].mxu0
        %v605 = vadd.f32 0.0, %v604
        %v606 = vpop.f32.mrb[0].mxu0
        %v607 = vpop.f32.mrb[0].mxu0
        %v608 = vadd.f32 0.0, %v607
        %v609 = vpop.f32.mrb[0].mxu0
        %610 = vmatprep.mubr.bf16.mxu0 0
        %611 = vmatmul.mubr.bf16.gmra.mrb[0].mxu0 %v471
        %v612 = vpop.f32.mrb[0].mxu0
        %v613 = vadd.f32 0.0, %v612
        %v614 = vpop.f32.mrb[0].mxu0
        %v615 = vpop.f32.mrb[0].mxu0
        %v616 = vadd.f32 0.0, %v615
        %v617 = vpop.f32.mrb[0].mxu0
        %618 = vmatprep.mubr.bf16.mxu0 0
        %619 = vmatmul.mubr.bf16.gmra.mrb[0].mxu0 %v472
        %v620 = vpop.f32.mrb[0].mxu0
        %v621 = vadd.f32 0.0, %v620
        %v622 = vpop.f32.mrb[0].mxu0
        %v623 = vpop.f32.mrb[0].mxu0
        %v624 = vadd.f32 0.0, %v623
        %v625 = vpop.f32.mrb[0].mxu0
        %626 = vmatprep.mubr.bf16.mxu0 0
        %627 = vmatmul.mubr.bf16.gmra.mrb[0].mxu0 %v473
        %v628 = vpop.f32.mrb[0].mxu0
        %v629 = vadd.f32 0.0, %v628
        %v630 = vpop.f32.mrb[0].mxu0
        %v631 = vpop.f32.mrb[0].mxu0
        %v632 = vadd.f32 0.0, %v631
        %v633 = vpop.f32.mrb[0].mxu0
        %634 = vdwg.mxu0
        %635 = vrot.lane.b32.xlu0 %v573, 32
        %v636 = vpop.permute.xlu0 %635
        %637 = vrot.lane.b32.xlu0 %v576, 32
        %v638 = vpop.permute.xlu0 %637
        %639 = vrot.lane.b32.xlu0 %v581, 32
        %v640 = vpop.permute.xlu0 %639
        %641 = vrot.lane.b32.xlu0 %v584, 32
        %v642 = vpop.permute.xlu0 %641
        %643 = vrot.lane.b32.xlu0 %v589, 32
        %v644 = vpop.permute.xlu0 %643
        %645 = vrot.lane.b32.xlu0 %v592, 32
        %v646 = vpop.permute.xlu0 %645
        %647 = vrot.lane.b32.xlu0 %v597, 32
        %v648 = vpop.permute.xlu0 %647
        %649 = vrot.lane.b32.xlu0 %v600, 32
        %v650 = vpop.permute.xlu0 %649
        %651 = vrot.lane.b32.xlu0 %v605, 32
        %v652 = vpop.permute.xlu0 %651
        %653 = vrot.lane.b32.xlu0 %v608, 32
        %v654 = vpop.permute.xlu0 %653
        %655 = vrot.lane.b32.xlu0 %v613, 32
        %v656 = vpop.permute.xlu0 %655
        %657 = vrot.lane.b32.xlu0 %v616, 32
        %v658 = vpop.permute.xlu0 %657
        %659 = vrot.lane.b32.xlu0 %v621, 32
        %v660 = vpop.permute.xlu0 %659
        %661 = vrot.lane.b32.xlu0 %v624, 32
        %v662 = vpop.permute.xlu0 %661
        %663 = vrot.lane.b32.xlu0 %v629, 32
        %v664 = vpop.permute.xlu0 %663
        %665 = vrot.lane.b32.xlu0 %v632, 32
        %v666 = vpop.permute.xlu0 %665
        %v667 = vmax.f32 %v573, %v636
        %v668 = vmax.f32 %v576, %v638
        %v669 = vmax.f32 %v581, %v640
        %v670 = vmax.f32 %v584, %v642
        %v671 = vmax.f32 %v589, %v644
        %v672 = vmax.f32 %v592, %v646
        %v673 = vmax.f32 %v597, %v648
        %v674 = vmax.f32 %v600, %v650
        %v675 = vmax.f32 %v605, %v652
        %v676 = vmax.f32 %v608, %v654
        %v677 = vmax.f32 %v613, %v656
        %v678 = vmax.f32 %v616, %v658
        %v679 = vmax.f32 %v621, %v660
        %v680 = vmax.f32 %v624, %v662
        %v681 = vmax.f32 %v629, %v664
        %v682 = vmax.f32 %v632, %v666
        %683 = vrot.lane.b32.xlu0 %v667, 64
        %v684 = vpop.permute.xlu0 %683
        %685 = vrot.lane.b32.xlu0 %v668, 64
        %v686 = vpop.permute.xlu0 %685
        %687 = vrot.lane.b32.xlu0 %v669, 64
        %v688 = vpop.permute.xlu0 %687
        %689 = vrot.lane.b32.xlu0 %v670, 64
        %v690 = vpop.permute.xlu0 %689
        %691 = vrot.lane.b32.xlu0 %v671, 64
        %v692 = vpop.permute.xlu0 %691
        %693 = vrot.lane.b32.xlu0 %v672, 64
        %v694 = vpop.permute.xlu0 %693
        %695 = vrot.lane.b32.xlu0 %v673, 64
        %v696 = vpop.permute.xlu0 %695
        %697 = vrot.lane.b32.xlu0 %v674, 64
        %v698 = vpop.permute.xlu0 %697
        %699 = vrot.lane.b32.xlu0 %v675, 64
        %v700 = vpop.permute.xlu0 %699
        %701 = vrot.lane.b32.xlu0 %v676, 64
        %v702 = vpop.permute.xlu0 %701
        %703 = vrot.lane.b32.xlu0 %v677, 64
        %v704 = vpop.permute.xlu0 %703
        %705 = vrot.lane.b32.xlu0 %v678, 64
        %v706 = vpop.permute.xlu0 %705
        %707 = vrot.lane.b32.xlu0 %v679, 64
        %v708 = vpop.permute.xlu0 %707
        %709 = vrot.lane.b32.xlu0 %v680, 64
        %v710 = vpop.permute.xlu0 %709
        %711 = vrot.lane.b32.xlu0 %v681, 64
        %v712 = vpop.permute.xlu0 %711
        %713 = vrot.lane.b32.xlu0 %v682, 64
        %v714 = vpop.permute.xlu0 %713
        %v715 = vmax.f32 %v667, %v684
        %v716 = vmax.f32 %v668, %v686
        %v717 = vmax.f32 %v669, %v688
        %v718 = vmax.f32 %v670, %v690
        %v719 = vmax.f32 %v671, %v692
        %v720 = vmax.f32 %v672, %v694
        %v721 = vmax.f32 %v673, %v696
        %v722 = vmax.f32 %v674, %v698
        %v723 = vmax.f32 %v675, %v700
        %v724 = vmax.f32 %v676, %v702
        %v725 = vmax.f32 %v677, %v704
        %v726 = vmax.f32 %v678, %v706
        %v727 = vmax.f32 %v679, %v708
        %v728 = vmax.f32 %v680, %v710
        %v729 = vmax.f32 %v681, %v712
        %v730 = vmax.f32 %v682, %v714
        %v731 = vsub.f32 %v573, %v715
        %v732 = vsub.f32 %v576, %v716
        %v733 = vsub.f32 %v581, %v717
        %v734 = vsub.f32 %v584, %v718
        %v735 = vsub.f32 %v589, %v719
        %v736 = vsub.f32 %v592, %v720
        %v737 = vsub.f32 %v597, %v721
        %v738 = vsub.f32 %v600, %v722
        %v739 = vsub.f32 %v605, %v723
        %v740 = vsub.f32 %v608, %v724
        %v741 = vsub.f32 %v613, %v725
        %v742 = vsub.f32 %v616, %v726
        %v743 = vsub.f32 %v621, %v727
        %v744 = vsub.f32 %v624, %v728
        %v745 = vsub.f32 %v629, %v729
        %v746 = vsub.f32 %v632, %v730
        %v747 = vmul.f32 %v731, 1.442695
        %v748 = vpow.pop %v747
        %v749 = vmul.f32 %v732, 1.442695
        %v750 = vpow.pop %v749
        %v751 = vmul.f32 %v733, 1.442695
        %v752 = vpow.pop %v751
        %v753 = vmul.f32 %v734, 1.442695
        %v754 = vpow.pop %v753
        %v755 = vmul.f32 %v735, 1.442695
        %v756 = vpow.pop %v755
        %v757 = vmul.f32 %v736, 1.442695
        %v758 = vpow.pop %v757
        %v759 = vmul.f32 %v737, 1.442695
        %v760 = vpow.pop %v759
        %v761 = vmul.f32 %v738, 1.442695
        %v762 = vpow.pop %v761
        %v763 = vmul.f32 %v739, 1.442695
        %v764 = vpow.pop %v763
        %v765 = vmul.f32 %v740, 1.442695
        %v766 = vpow.pop %v765
        %v767 = vmul.f32 %v741, 1.442695
        %v768 = vpow.pop %v767
        %v769 = vmul.f32 %v742, 1.442695
        %v770 = vpow.pop %v769
        %v771 = vmul.f32 %v743, 1.442695
        %v772 = vpow.pop %v771
        %v773 = vmul.f32 %v744, 1.442695
        %v774 = vpow.pop %v773
        %v775 = vmul.f32 %v745, 1.442695
        %v776 = vpow.pop %v775
        %v777 = vmul.f32 %v746, 1.442695
        %v778 = vpow.pop %v777
        %779 = vrot.lane.b32.xlu0 %v748, 32
        %v780 = vpop.permute.xlu0 %779
        %781 = vrot.lane.b32.xlu0 %v750, 32
        %v782 = vpop.permute.xlu0 %781
        %783 = vrot.lane.b32.xlu0 %v752, 32
        %v784 = vpop.permute.xlu0 %783
        %785 = vrot.lane.b32.xlu0 %v754, 32
        %v786 = vpop.permute.xlu0 %785
        %787 = vrot.lane.b32.xlu0 %v756, 32
        %v788 = vpop.permute.xlu0 %787
        %789 = vrot.lane.b32.xlu0 %v758, 32
        %v790 = vpop.permute.xlu0 %789
        %791 = vrot.lane.b32.xlu0 %v760, 32
        %v792 = vpop.permute.xlu0 %791
        %793 = vrot.lane.b32.xlu0 %v762, 32
        %v794 = vpop.permute.xlu0 %793
        %795 = vrot.lane.b32.xlu0 %v764, 32
        %v796 = vpop.permute.xlu0 %795
        %797 = vrot.lane.b32.xlu0 %v766, 32
        %v798 = vpop.permute.xlu0 %797
        %799 = vrot.lane.b32.xlu0 %v768, 32
        %v800 = vpop.permute.xlu0 %799
        %801 = vrot.lane.b32.xlu0 %v770, 32
        %v802 = vpop.permute.xlu0 %801
        %803 = vrot.lane.b32.xlu0 %v772, 32
        %v804 = vpop.permute.xlu0 %803
        %805 = vrot.lane.b32.xlu0 %v774, 32
        %v806 = vpop.permute.xlu0 %805
        %807 = vrot.lane.b32.xlu0 %v776, 32
        %v808 = vpop.permute.xlu0 %807
        %809 = vrot.lane.b32.xlu0 %v778, 32
        %v810 = vpop.permute.xlu0 %809
        %v811 = vadd.f32 %v748, %v780
        %v812 = vadd.f32 %v750, %v782
        %v813 = vadd.f32 %v752, %v784
        %v814 = vadd.f32 %v754, %v786
        %v815 = vadd.f32 %v756, %v788
        %v816 = vadd.f32 %v758, %v790
        %v817 = vadd.f32 %v760, %v792
        %v818 = vadd.f32 %v762, %v794
        %v819 = vadd.f32 %v764, %v796
        %v820 = vadd.f32 %v766, %v798
        %v821 = vadd.f32 %v768, %v800
        %v822 = vadd.f32 %v770, %v802
        %v823 = vadd.f32 %v772, %v804
        %v824 = vadd.f32 %v774, %v806
        %v825 = vadd.f32 %v776, %v808
        %v826 = vadd.f32 %v778, %v810
        %827 = vrot.lane.b32.xlu0 %v811, 64
        %v828 = vpop.permute.xlu0 %827
        %829 = vrot.lane.b32.xlu0 %v812, 64
        %v830 = vpop.permute.xlu0 %829
        %831 = vrot.lane.b32.xlu0 %v813, 64
        %v832 = vpop.permute.xlu0 %831
        %833 = vrot.lane.b32.xlu0 %v814, 64
        %v834 = vpop.permute.xlu0 %833
        %835 = vrot.lane.b32.xlu0 %v815, 64
        %v836 = vpop.permute.xlu0 %835
        %837 = vrot.lane.b32.xlu0 %v816, 64
        %v838 = vpop.permute.xlu0 %837
        %839 = vrot.lane.b32.xlu0 %v817, 64
        %v840 = vpop.permute.xlu0 %839
        %841 = vrot.lane.b32.xlu0 %v818, 64
        %v842 = vpop.permute.xlu0 %841
        %843 = vrot.lane.b32.xlu0 %v819, 64
        %v844 = vpop.permute.xlu0 %843
        %845 = vrot.lane.b32.xlu0 %v820, 64
        %v846 = vpop.permute.xlu0 %845
        %847 = vrot.lane.b32.xlu0 %v821, 64
        %v848 = vpop.permute.xlu0 %847
        %849 = vrot.lane.b32.xlu0 %v822, 64
        %v850 = vpop.permute.xlu0 %849
        %851 = vrot.lane.b32.xlu0 %v823, 64
        %v852 = vpop.permute.xlu0 %851
        %853 = vrot.lane.b32.xlu0 %v824, 64
        %v854 = vpop.permute.xlu0 %853
        %855 = vrot.lane.b32.xlu0 %v825, 64
        %v856 = vpop.permute.xlu0 %855
        %857 = vrot.lane.b32.xlu0 %v826, 64
        %v858 = vpop.permute.xlu0 %857
        %v859 = vadd.f32 %v811, %v828
        %v860 = vadd.f32 %v812, %v830
        %v861 = vadd.f32 %v813, %v832
        %v862 = vadd.f32 %v814, %v834
        %v863 = vadd.f32 %v815, %v836
        %v864 = vadd.f32 %v816, %v838
        %v865 = vadd.f32 %v817, %v840
        %v866 = vadd.f32 %v818, %v842
        %v867 = vadd.f32 %v819, %v844
        %v868 = vadd.f32 %v820, %v846
        %v869 = vadd.f32 %v821, %v848
        %v870 = vadd.f32 %v822, %v850
        %v871 = vadd.f32 %v823, %v852
        %v872 = vadd.f32 %v824, %v854
        %v873 = vadd.f32 %v825, %v856
        %v874 = vadd.f32 %v826, %v858
        %v875 = vrcp.pop %v859
        %v876 = vrcp.pop %v860
        %v877 = vrcp.pop %v861
        %v878 = vrcp.pop %v862
        %v879 = vrcp.pop %v863
        %v880 = vrcp.pop %v864
        %v881 = vrcp.pop %v865
        %v882 = vrcp.pop %v866
        %v883 = vrcp.pop %v867
        %v884 = vrcp.pop %v868
        %v885 = vrcp.pop %v869
        %v886 = vrcp.pop %v870
        %v887 = vrcp.pop %v871
        %v888 = vrcp.pop %v872
        %v889 = vrcp.pop %v873
        %v890 = vrcp.pop %v874
        %v891 = vmul.f32 %v748, %v875
        %v892 = vmul.f32 %v750, %v876
        %v893 = vmul.f32 %v752, %v877
        %v894 = vmul.f32 %v754, %v878
        %v895 = vmul.f32 %v756, %v879
        %v896 = vmul.f32 %v758, %v880
        %v897 = vmul.f32 %v760, %v881
        %v898 = vmul.f32 %v762, %v882
        %v899 = vmul.f32 %v764, %v883
        %v900 = vmul.f32 %v766, %v884
        %v901 = vmul.f32 %v768, %v885
        %v902 = vmul.f32 %v770, %v886
        %v903 = vmul.f32 %v772, %v887
        %v904 = vmul.f32 %v774, %v888
        %v905 = vmul.f32 %v776, %v889
        %v906 = vmul.f32 %v778, %v890
        %v907 = vmul.f32 %v891, %v258
        %v908 = vmul.f32 %v892, %v259
        %v909 = vmul.f32 %v893, %v260
        %v910 = vmul.f32 %v894, %v261
        %v911 = vmul.f32 %v895, %v262
        %v912 = vmul.f32 %v896, %v263
        %v913 = vmul.f32 %v897, %v264
        %v914 = vmul.f32 %v898, %v265
        %v915 = vmul.f32 %v899, %v266
        %v916 = vmul.f32 %v900, %v267
        %v917 = vmul.f32 %v901, %v268
        %v918 = vmul.f32 %v902, %v269
        %v919 = vmul.f32 %v903, %v270
        %v920 = vmul.f32 %v904, %v271
        %v921 = vmul.f32 %v905, %v272
        %v922 = vmul.f32 %v906, %v273
        %923 = vrot.lane.b32.xlu0 %v907, 32
        %v924 = vpop.permute.xlu0 %923
        %925 = vrot.lane.b32.xlu0 %v908, 32
        %v926 = vpop.permute.xlu0 %925
        %927 = vrot.lane.b32.xlu0 %v909, 32
        %v928 = vpop.permute.xlu0 %927
        %929 = vrot.lane.b32.xlu0 %v910, 32
        %v930 = vpop.permute.xlu0 %929
        %931 = vrot.lane.b32.xlu0 %v911, 32
        %v932 = vpop.permute.xlu0 %931
        %933 = vrot.lane.b32.xlu0 %v912, 32
        %v934 = vpop.permute.xlu0 %933
        %935 = vrot.lane.b32.xlu0 %v913, 32
        %v936 = vpop.permute.xlu0 %935
        %937 = vrot.lane.b32.xlu0 %v914, 32
        %v938 = vpop.permute.xlu0 %937
        %939 = vrot.lane.b32.xlu0 %v915, 32
        %v940 = vpop.permute.xlu0 %939
        %941 = vrot.lane.b32.xlu0 %v916, 32
        %v942 = vpop.permute.xlu0 %941
        %943 = vrot.lane.b32.xlu0 %v917, 32
        %v944 = vpop.permute.xlu0 %943
        %945 = vrot.lane.b32.xlu0 %v918, 32
        %v946 = vpop.permute.xlu0 %945
        %947 = vrot.lane.b32.xlu0 %v919, 32
        %v948 = vpop.permute.xlu0 %947
        %949 = vrot.lane.b32.xlu0 %v920, 32
        %v950 = vpop.permute.xlu0 %949
        %951 = vrot.lane.b32.xlu0 %v921, 32
        %v952 = vpop.permute.xlu0 %951
        %953 = vrot.lane.b32.xlu0 %v922, 32
        %v954 = vpop.permute.xlu0 %953
        %v955 = vadd.f32 %v907, %v924
        %v956 = vadd.f32 %v908, %v926
        %v957 = vadd.f32 %v909, %v928
        %v958 = vadd.f32 %v910, %v930
        %v959 = vadd.f32 %v911, %v932
        %v960 = vadd.f32 %v912, %v934
        %v961 = vadd.f32 %v913, %v936
        %v962 = vadd.f32 %v914, %v938
        %v963 = vadd.f32 %v915, %v940
        %v964 = vadd.f32 %v916, %v942
        %v965 = vadd.f32 %v917, %v944
        %v966 = vadd.f32 %v918, %v946
        %v967 = vadd.f32 %v919, %v948
        %v968 = vadd.f32 %v920, %v950
        %v969 = vadd.f32 %v921, %v952
        %v970 = vadd.f32 %v922, %v954
        %971 = vrot.lane.b32.xlu0 %v955, 64
        %v972 = vpop.permute.xlu0 %971
        %973 = vrot.lane.b32.xlu0 %v956, 64
        %v974 = vpop.permute.xlu0 %973
        %975 = vrot.lane.b32.xlu0 %v957, 64
        %v976 = vpop.permute.xlu0 %975
        %977 = vrot.lane.b32.xlu0 %v958, 64
        %v978 = vpop.permute.xlu0 %977
        %979 = vrot.lane.b32.xlu0 %v959, 64
        %v980 = vpop.permute.xlu0 %979
        %981 = vrot.lane.b32.xlu0 %v960, 64
        %v982 = vpop.permute.xlu0 %981
        %983 = vrot.lane.b32.xlu0 %v961, 64
        %v984 = vpop.permute.xlu0 %983
        %985 = vrot.lane.b32.xlu0 %v962, 64
        %v986 = vpop.permute.xlu0 %985
        %987 = vrot.lane.b32.xlu0 %v963, 64
        %v988 = vpop.permute.xlu0 %987
        %989 = vrot.lane.b32.xlu0 %v964, 64
        %v990 = vpop.permute.xlu0 %989
        %991 = vrot.lane.b32.xlu0 %v965, 64
        %v992 = vpop.permute.xlu0 %991
        %993 = vrot.lane.b32.xlu0 %v966, 64
        %v994 = vpop.permute.xlu0 %993
        %995 = vrot.lane.b32.xlu0 %v967, 64
        %v996 = vpop.permute.xlu0 %995
        %997 = vrot.lane.b32.xlu0 %v968, 64
        %v998 = vpop.permute.xlu0 %997
        %999 = vrot.lane.b32.xlu0 %v969, 64
        %v1000 = vpop.permute.xlu0 %999
        %1001 = vrot.lane.b32.xlu0 %v970, 64
        %v1002 = vpop.permute.xlu0 %1001
        %v1003 = vadd.f32 %v955, %v972
        %v1004 = vadd.f32 %v956, %v974
        %v1005 = vadd.f32 %v957, %v976
        %v1006 = vadd.f32 %v958, %v978
        %v1007 = vadd.f32 %v959, %v980
        %v1008 = vadd.f32 %v960, %v982
        %v1009 = vadd.f32 %v961, %v984
        %v1010 = vadd.f32 %v962, %v986
        %v1011 = vadd.f32 %v963, %v988
        %v1012 = vadd.f32 %v964, %v990
        %v1013 = vadd.f32 %v965, %v992
        %v1014 = vadd.f32 %v966, %v994
        %v1015 = vadd.f32 %v967, %v996
        %v1016 = vadd.f32 %v968, %v998
        %v1017 = vadd.f32 %v969, %v1000
        %v1018 = vadd.f32 %v970, %v1002
        %vm1019 = vcmask 261120
        %1020 = vst.msk [vmem:[%s246] sm:$0xff] %vm1019, %v1003
        %1021 = vst.msk [vmem:[%s246 + $0x8] sm:$0xff] %vm1019, %v1004
        %1022 = vst.msk [vmem:[%s246 + $0x10] sm:$0xff] %vm1019, %v1005
        %1023 = vst.msk [vmem:[%s246 + $0x18] sm:$0xff] %vm1019, %v1006
        %1024 = vst.msk [vmem:[%s246 + $0x20] sm:$0xff] %vm1019, %v1007
        %1025 = vst.msk [vmem:[%s246 + $0x28] sm:$0xff] %vm1019, %v1008
        %1026 = vst.msk [vmem:[%s246 + $0x30] sm:$0xff] %vm1019, %v1009
        %1027 = vst.msk [vmem:[%s246 + $0x38] sm:$0xff] %vm1019, %v1010
        %1028 = vst.msk [vmem:[%s246 + $0x40] sm:$0xff] %vm1019, %v1011
        %1029 = vst.msk [vmem:[%s246 + $0x48] sm:$0xff] %vm1019, %v1012
        %1030 = vst.msk [vmem:[%s246 + $0x50] sm:$0xff] %vm1019, %v1013
        %1031 = vst.msk [vmem:[%s246 + $0x58] sm:$0xff] %vm1019, %v1014
        %1032 = vst.msk [vmem:[%s246 + $0x60] sm:$0xff] %vm1019, %v1015
        %1033 = vst.msk [vmem:[%s246 + $0x68] sm:$0xff] %vm1019, %v1016
        %1034 = vst.msk [vmem:[%s246 + $0x70] sm:$0xff] %vm1019, %v1017
        %1035 = vst.msk [vmem:[%s246 + $0x78] sm:$0xff] %vm1019, %v1018
        %s1036 = sand.u32 %s116, 1
        %s1037 = sand.u32 %s116, 1
        %s1038 = smul.addr %s1037, 128
        %s1039 = scalar_lea.vmem [#allocation7], %s1038
        // Predicated region
        $region49: #{tpu_custom_call.1} parent=35 // pred_check
          %p1040 = pneg %p126
        $region50: #{tpu_custom_call.1} parent=35 // pred_check_branch
          %1042 = sbr.rel (%p1040) target = $region52
        $region51: #{tpu_custom_call.1} parent=35 // pred_region
          %s1043 = smul.u32 16, %s19
          %s1044 = ssub.s32 38, %s1043
          %p1045 = scmp.lt.s32.totalorder %s1044, 16
          %s1046 = scalar_select %p1045, %s1044, 16
          %s1047 = smul.u32 128, %s1046
          %p1048 = scmp.ne.s32.totalorder 0, %s1047
          %s1049 = smul.addr %s1043, 8
          %s1050 = scalar_lea.vmem %s4, %s1049
          // Predicated region
          $region53: #{tpu_custom_call.1} parent=51 // pred_check
            %p1051 = pneg %p1048
          $region54: #{tpu_custom_call.1} parent=51 // pred_check_branch
            %1053 = sbr.rel (%p1051) target = $region56
          $region55: #{tpu_custom_call.1} parent=51 // pred_region
            // Predicated region
            $region57: #{tpu_custom_call.1} parent=55 // pred_check
              _
            $region58: #{tpu_custom_call.1} parent=55 // pred_check_branch
              %1055 = sbr.rel (0) target = $region60
            $region59: #{tpu_custom_call.1} parent=55 // pred_region
              // Predicated region
              $region79: #{tpu_custom_call.1} parent=59 // pred_check
                _
              $region80: #{tpu_custom_call.1} parent=59 // pred_check_branch
                %1134 = sbr.rel (0) target = $region82
              $region81: #{tpu_custom_call.1} parent=59 // pred_region
                %s1135 = sshrl.u32 %s1046, 4
                // While loop
                $region83: #{tpu_custom_call.1} parent=81 // loop_pre_header
                  _
                $region84: #{tpu_custom_call.1} parent=81 // loop_header
                  %s1137 = sphi 0, %s1139
                  %p1138 = scmp.ge.s32.totalorder %s1137, %s1135
                  %s1142 = sphi 0, %s1179
                  %s1143 = sphi %s1039, %s1182
                  %s1144 = sphi %s1050, %s1183
                $region85: #{tpu_custom_call.1} parent=81 // loop_header_branch
                  %1141 = sbr.rel (%p1138) target = $region89
                $region86: #{tpu_custom_call.1} parent=81 // loop_body
                  %v1145 = vld [vmem:[%s1143] sm:$0xff]
                  %1146 = vst [vmem:[%s1144] sm:$0xff] %v1145
                  %v1147 = vld [vmem:[%s1143 + $0x8] sm:$0xff]
                  %1148 = vst [vmem:[%s1144 + $0x8] sm:$0xff] %v1147
                  %v1149 = vld [vmem:[%s1143 + $0x10] sm:$0xff]
                  %1150 = vst [vmem:[%s1144 + $0x10] sm:$0xff] %v1149
                  %v1151 = vld [vmem:[%s1143 + $0x18] sm:$0xff]
                  %1152 = vst [vmem:[%s1144 + $0x18] sm:$0xff] %v1151
                  %v1153 = vld [vmem:[%s1143 + $0x20] sm:$0xff]
                  %1154 = vst [vmem:[%s1144 + $0x20] sm:$0xff] %v1153
                  %v1155 = vld [vmem:[%s1143 + $0x28] sm:$0xff]
                  %1156 = vst [vmem:[%s1144 + $0x28] sm:$0xff] %v1155
                  %v1157 = vld [vmem:[%s1143 + $0x30] sm:$0xff]
                  %1158 = vst [vmem:[%s1144 + $0x30] sm:$0xff] %v1157
                  %v1159 = vld [vmem:[%s1143 + $0x38] sm:$0xff]
                  %1160 = vst [vmem:[%s1144 + $0x38] sm:$0xff] %v1159
                  %v1161 = vld [vmem:[%s1143 + $0x40] sm:$0xff]
                  %1162 = vst [vmem:[%s1144 + $0x40] sm:$0xff] %v1161
                  %v1163 = vld [vmem:[%s1143 + $0x48] sm:$0xff]
                  %1164 = vst [vmem:[%s1144 + $0x48] sm:$0xff] %v1163
                  %v1165 = vld [vmem:[%s1143 + $0x50] sm:$0xff]
                  %1166 = vst [vmem:[%s1144 + $0x50] sm:$0xff] %v1165
                  %v1167 = vld [vmem:[%s1143 + $0x58] sm:$0xff]
                  %1168 = vst [vmem:[%s1144 + $0x58] sm:$0xff] %v1167
                  %v1169 = vld [vmem:[%s1143 + $0x60] sm:$0xff]
                  %1170 = vst [vmem:[%s1144 + $0x60] sm:$0xff] %v1169
                  %v1171 = vld [vmem:[%s1143 + $0x68] sm:$0xff]
                  %1172 = vst [vmem:[%s1144 + $0x68] sm:$0xff] %v1171
                  %v1173 = vld [vmem:[%s1143 + $0x70] sm:$0xff]
                  %1174 = vst [vmem:[%s1144 + $0x70] sm:$0xff] %v1173
                  %v1175 = vld [vmem:[%s1143 + $0x78] sm:$0xff]
                  %1176 = vst [vmem:[%s1144 + $0x78] sm:$0xff] %v1175
                  %s1177 = sadd.s32 1, %s1142
                  %p1178 = scmp.ge.s32.totalorder %s1177, %s1135
                  %s1179 = scalar_select %p1178, 0, %s1177
                  %s1180 = smul.u32 %s1179, 128
                  %s1181 = smul.u32 %s1179, 128
                  %s1182 = scalar_lea.vmem %s1039, %s1180 [#allocation7]
                  %s1183 = scalar_lea.vmem %s1050, %s1181
                $region87: #{tpu_custom_call.1} parent=81 // loop_footer
                  %s1139 = sadd.s32 %s1137, 1
                $region88: #{tpu_custom_call.1} parent=81 // loop_footer_branch
                  %1136 = sbr.rel target = $region84
                $region89: #{tpu_custom_call.1} parent=81 // loop_exit
                  _
                %s1184 = sshrl.u32 %s1046, 4
                %s1185 = sand.u32 %s1046, 15
                %s1186 = smul.u32 %s1184, 16
                %s1187 = smul.u32 8, %s1186
                %s1188 = scalar_lea.vmem %s1039, %s1187 [#allocation7]
                %s1189 = smul.u32 8, %s1186
                %s1190 = scalar_lea.vmem %s1050, %s1189
                // While loop
                $region90: #{tpu_custom_call.1} parent=81 // loop_pre_header
                  _
                $region91: #{tpu_custom_call.1} parent=81 // loop_header
                  %s1192 = sphi 0, %s1194
                  %p1193 = scmp.ge.s32.totalorder %s1192, %s1185
                  %s1197 = sphi 0, %s1204
                  %s1198 = sphi %s1188, %s1207
                  %s1199 = sphi %s1190, %s1208
                $region92: #{tpu_custom_call.1} parent=81 // loop_header_branch
                  %1196 = sbr.rel (%p1193) target = $region96
                $region93: #{tpu_custom_call.1} parent=81 // loop_body
                  %v1200 = vld [vmem:[%s1198] sm:$0xff]
                  %1201 = vst [vmem:[%s1199] sm:$0xff] %v1200
                  %s1202 = sadd.s32 1, %s1197
                  %p1203 = scmp.ge.s32.totalorder %s1202, %s1185
                  %s1204 = scalar_select %p1203, 0, %s1202
                  %s1205 = smul.u32 %s1204, 8
                  %s1206 = smul.u32 %s1204, 8
                  %s1207 = scalar_lea.vmem %s1188, %s1205 [#allocation7]
                  %s1208 = scalar_lea.vmem %s1190, %s1206
                $region94: #{tpu_custom_call.1} parent=81 // loop_footer
                  %s1194 = sadd.s32 %s1192, 1
                $region95: #{tpu_custom_call.1} parent=81 // loop_footer_branch
                  %1191 = sbr.rel target = $region91
                $region96: #{tpu_custom_call.1} parent=81 // loop_exit
                  _
              $region82: #{tpu_custom_call.1} parent=59 // pred_fallthru
                _
              // Predicated region
              $region97: #{tpu_custom_call.1} parent=59 // pred_check
                _
              $region98: #{tpu_custom_call.1} parent=59 // pred_check_branch
                %1210 = sbr.rel target = $region100
              $region99: #{tpu_custom_call.1} parent=59 // pred_region
                _
              $region100: #{tpu_custom_call.1} parent=59 // pred_fallthru
                _
            $region60: #{tpu_custom_call.1} parent=55 // pred_fallthru
              _
            // Predicated region
            $region61: #{tpu_custom_call.1} parent=55 // pred_check
              _
            $region62: #{tpu_custom_call.1} parent=55 // pred_check_branch
              %1057 = sbr.rel target = $region64
            $region63: #{tpu_custom_call.1} parent=55 // pred_region
              %s1059 = sshrl.u32 %s1046, 4
              // While loop
              $region65: #{tpu_custom_call.1} parent=63 // loop_pre_header
                _
              $region66: #{tpu_custom_call.1} parent=63 // loop_header
                %s1061 = sphi 0, %s1063
                %p1062 = scmp.ge.s32.totalorder %s1061, %s1059
                %s1066 = sphi 0, %s1103
                %s1067 = sphi %s1039, %s1106
                %s1068 = sphi %s1050, %s1107
              $region67: #{tpu_custom_call.1} parent=63 // loop_header_branch
                %1065 = sbr.rel (%p1062) target = $region71
              $region68: #{tpu_custom_call.1} parent=63 // loop_body
                %v1069 = vld [vmem:[%s1067] sm:$0xff]
                %1070 = vst [vmem:[%s1068] sm:$0xff] %v1069
                %v1071 = vld [vmem:[%s1067 + $0x8] sm:$0xff]
                %1072 = vst [vmem:[%s1068 + $0x8] sm:$0xff] %v1071
                %v1073 = vld [vmem:[%s1067 + $0x10] sm:$0xff]
                %1074 = vst [vmem:[%s1068 + $0x10] sm:$0xff] %v1073
                %v1075 = vld [vmem:[%s1067 + $0x18] sm:$0xff]
                %1076 = vst [vmem:[%s1068 + $0x18] sm:$0xff] %v1075
                %v1077 = vld [vmem:[%s1067 + $0x20] sm:$0xff]
                %1078 = vst [vmem:[%s1068 + $0x20] sm:$0xff] %v1077
                %v1079 = vld [vmem:[%s1067 + $0x28] sm:$0xff]
                %1080 = vst [vmem:[%s1068 + $0x28] sm:$0xff] %v1079
                %v1081 = vld [vmem:[%s1067 + $0x30] sm:$0xff]
                %1082 = vst [vmem:[%s1068 + $0x30] sm:$0xff] %v1081
                %v1083 = vld [vmem:[%s1067 + $0x38] sm:$0xff]
                %1084 = vst [vmem:[%s1068 + $0x38] sm:$0xff] %v1083
                %v1085 = vld [vmem:[%s1067 + $0x40] sm:$0xff]
                %1086 = vst [vmem:[%s1068 + $0x40] sm:$0xff] %v1085
                %v1087 = vld [vmem:[%s1067 + $0x48] sm:$0xff]
                %1088 = vst [vmem:[%s1068 + $0x48] sm:$0xff] %v1087
                %v1089 = vld [vmem:[%s1067 + $0x50] sm:$0xff]
                %1090 = vst [vmem:[%s1068 + $0x50] sm:$0xff] %v1089
                %v1091 = vld [vmem:[%s1067 + $0x58] sm:$0xff]
                %1092 = vst [vmem:[%s1068 + $0x58] sm:$0xff] %v1091
                %v1093 = vld [vmem:[%s1067 + $0x60] sm:$0xff]
                %1094 = vst [vmem:[%s1068 + $0x60] sm:$0xff] %v1093
                %v1095 = vld [vmem:[%s1067 + $0x68] sm:$0xff]
                %1096 = vst [vmem:[%s1068 + $0x68] sm:$0xff] %v1095
                %v1097 = vld [vmem:[%s1067 + $0x70] sm:$0xff]
                %1098 = vst [vmem:[%s1068 + $0x70] sm:$0xff] %v1097
                %v1099 = vld [vmem:[%s1067 + $0x78] sm:$0xff]
                %1100 = vst [vmem:[%s1068 + $0x78] sm:$0xff] %v1099
                %s1101 = sadd.s32 1, %s1066
                %p1102 = scmp.ge.s32.totalorder %s1101, %s1059
                %s1103 = scalar_select %p1102, 0, %s1101
                %s1104 = smul.u32 %s1103, 128
                %s1105 = smul.u32 %s1103, 128
                %s1106 = scalar_lea.vmem %s1039, %s1104 [#allocation7]
                %s1107 = scalar_lea.vmem %s1050, %s1105
              $region69: #{tpu_custom_call.1} parent=63 // loop_footer
                %s1063 = sadd.s32 %s1061, 1
              $region70: #{tpu_custom_call.1} parent=63 // loop_footer_branch
                %1060 = sbr.rel target = $region66
              $region71: #{tpu_custom_call.1} parent=63 // loop_exit
                _
              %s1108 = sshrl.u32 %s1046, 4
              %s1109 = sand.u32 %s1046, 15
              %s1110 = smul.u32 %s1108, 16
              %s1111 = smul.u32 8, %s1110
              %s1112 = scalar_lea.vmem %s1039, %s1111 [#allocation7]
              %s1113 = smul.u32 8, %s1110
              %s1114 = scalar_lea.vmem %s1050, %s1113
              // While loop
              $region72: #{tpu_custom_call.1} parent=63 // loop_pre_header
                _
              $region73: #{tpu_custom_call.1} parent=63 // loop_header
                %s1116 = sphi 0, %s1118
                %p1117 = scmp.ge.s32.totalorder %s1116, %s1109
                %s1121 = sphi 0, %s1128
                %s1122 = sphi %s1112, %s1131
                %s1123 = sphi %s1114, %s1132
              $region74: #{tpu_custom_call.1} parent=63 // loop_header_branch
                %1120 = sbr.rel (%p1117) target = $region78
              $region75: #{tpu_custom_call.1} parent=63 // loop_body
                %v1124 = vld [vmem:[%s1122] sm:$0xff]
                %1125 = vst [vmem:[%s1123] sm:$0xff] %v1124
                %s1126 = sadd.s32 1, %s1121
                %p1127 = scmp.ge.s32.totalorder %s1126, %s1109
                %s1128 = scalar_select %p1127, 0, %s1126
                %s1129 = smul.u32 %s1128, 8
                %s1130 = smul.u32 %s1128, 8
                %s1131 = scalar_lea.vmem %s1112, %s1129 [#allocation7]
                %s1132 = scalar_lea.vmem %s1114, %s1130
              $region76: #{tpu_custom_call.1} parent=63 // loop_footer
                %s1118 = sadd.s32 %s1116, 1
              $region77: #{tpu_custom_call.1} parent=63 // loop_footer_branch
                %1115 = sbr.rel target = $region73
              $region78: #{tpu_custom_call.1} parent=63 // loop_exit
                _
            $region64: #{tpu_custom_call.1} parent=55 // pred_fallthru
              _
          $region56: #{tpu_custom_call.1} parent=51 // pred_fallthru
            _
          %1211 = vnop
        $region52: #{tpu_custom_call.1} parent=35 // pred_fallthru
          _
      $region36: #{tpu_custom_call.1} parent=5 // pred_fallthru
        _
      %p1212 = scmp.le.s32.totalorder 2, %s14
      // Predicated region
      $region101: #{tpu_custom_call.1} parent=5 // pred_check
        %p1213 = pneg %p1212
      $region102: #{tpu_custom_call.1} parent=5 // pred_check_branch
        %1215 = sbr.rel (%p1213) target = $region104
      $region103: #{tpu_custom_call.1} parent=5 // pred_region
        %s1216 = ssub.s32 %s14, 2
        // Predicated region
        $region105: #{tpu_custom_call.1} parent=103 // pred_check
          %p1217 = pneg %p132
        $region106: #{tpu_custom_call.1} parent=103 // pred_check_branch
          %1219 = sbr.rel (%p1217) target = $region108
        $region107: #{tpu_custom_call.1} parent=103 // pred_region
          %s1220 = sand.u32 %s117, 1
          %s1221 = sand.u32 %s117, 1
          %s1222 = smul.addr %s1221, 128
          %s1223 = scalar_lea.vmem [#allocation7], %s1222
        $region108: #{tpu_custom_call.1} parent=103 // pred_fallthru
          _
      $region104: #{tpu_custom_call.1} parent=5 // pred_fallthru
        _
    $region6: #{tpu_custom_call.1} parent=1 // loop_footer
      %s18 = sadd.s32 1, %s14
    $region7: #{tpu_custom_call.1} parent=1 // loop_footer_branch
      %13 = sbr.rel target = $region3
    $region8: #{tpu_custom_call.1} parent=1 // loop_exit
      _
    %1224 = vsyncpa [#allocation3], 1
    %s1225 = scalar_lea.sflag [#allocation3], 1
    %1226 = vsyncpa %s1225, 1
    %1227 = vsyncpa [#allocation5], 1

</llo_original>
